<compile_context>
chip_gen: v6e
topology: v6e:2x2x1
jax: 0.10.0
libtpu: 0.0.40
codegen_flags: <defaults>
</compile_context>

<pallas_src>
import jax
import jax.numpy as jnp
from jax.experimental import pallas as pl
from jax.experimental.pallas import tpu as pltpu


# ----------------------------------------------------------------------------
# Pallas kernel: fused combined_model epilogue + predictor MLP
#   feats = tanh(token_feat + graph_feat)
#   h     = ReLU(feats @ W1 + b1)          (Dropout(p) is identity at inference)
#   out   = sum(h * w2_row, lanes) + b2    (== h @ W2 + b2, W2 is (hidden, 1))
# ----------------------------------------------------------------------------
def predictor_kernel(tf_ref, gf_ref, w1_ref, b1_ref, w2_ref, b2_ref, out_ref):
    # Fused combined_model epilogue (EUP tanh + VPU add), f32 elementwise math.
    # Note: with dim=32 only 32 of 128 lanes per vreg are live here; lane-dense
    # repacking is not worth it at these sizes (EUP/VALU work is us-scale).
    feats = jnp.tanh(tf_ref[...] + gf_ref[...])                       # (TB, dim) f32

    # Linear(dim, 2*dim) on the MXU with f32 operands + f32 accumulation.
    h = jnp.dot(feats, w1_ref[...], preferred_element_type=jnp.float32) + b1_ref[...]
    h = jnp.maximum(h, 0.0)  # ReLU; Dropout(p=0.2) == identity (eval/inference mode)
    # TODO(synk): a training-mode forward would need a PRNG dropout mask
    # (pltpu.prng_seed + pltpu.prng_random_bits); inference-only here.

    # Linear(2*dim, 1): 1-wide output -> VPU multiply + XLU lane reduce instead
    # of a nearly-empty MXU matmul.  b2 comes from SMEM as a scalar.
    col = jnp.sum(h * w2_ref[...], axis=-1, keepdims=True) + b2_ref[0, 0]  # (TB, 1)

    # Column store: HBM writeback is 4 B/row (128x less than a broadcast slab),
    # and the wrapper needs no separate slice kernel.
    out_ref[...] = col.astype(out_ref.dtype)


def _choose_tile_b(b_pad, max_tile_b):
    """Pick the batch tile.

    The tile is a multiple of 8 that divides b_pad exactly (so the wrapper never
    rounds b_pad up to a tile multiple and never pads more than 7 rows), and is
    as large as possible (amortizes the ~0.35 us fixed per-grid-step overhead).
    When splitting into >=2 grid steps costs at most ~4x the step count we do
    so, because the batch axis is marked "parallel" and a >=2-step grid lets a
    v7x chip shard the work across both TensorCores (on v5e/v6e the extra step
    overhead is negligible).
    """
    units = b_pad // 8
    divisor_tiles = [8 * d for d in range(1, units + 1) if units % d == 0]
    fits = [t for t in divisor_tiles if t <= max_tile_b]
    tile_b = max(fits)                              # fewest grid steps
    multi = [t for t in fits if b_pad // t >= 2]    # tiles giving >=2 steps
    if multi and 4 * max(multi) >= tile_b:
        tile_b = max(multi)
    return tile_b


def predictor_pallas(token_feat, graph_feat, w1, b1, w2, b2, *, max_tile_b=1024):
    """feats = tanh(token_feat + graph_feat); returns predictor(feats) of shape (B, 1)."""
    B, dim = token_feat.shape
    hidden = w1.shape[1]

    # Pad the batch only to a sublane multiple (<= 7 junk rows).  tile_b is then
    # chosen as an exact divisor of b_pad, so no further padding (and no full
    # jnp.pad copy of the inputs for tile alignment) is ever needed.
    b_pad = ((B + 7) // 8) * 8
    if b_pad != B:
        pad = b_pad - B
        token_feat = jnp.pad(token_feat, ((0, pad), (0, 0)))
        graph_feat = jnp.pad(graph_feat, ((0, pad), (0, 0)))

    tile_b = _choose_tile_b(b_pad, max_tile_b)
    grid = (b_pad // tile_b,)

    w1_f32 = w1.astype(jnp.float32)
    b1_row = b1.reshape(1, hidden).astype(jnp.float32)
    w2_row = w2.reshape(1, hidden).astype(jnp.float32)
    b2_s = b2.reshape(1, 1).astype(jnp.float32)       # SMEM scalar

    # VMEM per step (double-buffered activations) is roughly
    #   2*(2*tile_b*dim*4) + dim*hidden*4 + tile_b*4  bytes,
    # i.e. well under 1 MiB even at tile_b=1024 / dim=32 — far below every
    # generation's scoped VMEM limit (v5e/v6e default 16/32 MiB of 128 MiB
    # physical; v7x default 32 MiB of 64 MiB physical).
    # TODO(synk): if dim/hidden grow substantially, set
    # pltpu.CompilerParams(vmem_limit_bytes=...) explicitly and K-tile W1 over
    # dim with an f32 VMEM accumulator on a trailing "arbitrary" grid axis.

    cost = pl.CostEstimate(
        flops=2 * b_pad * dim * hidden + 2 * b_pad * hidden,
        transcendentals=b_pad * dim,
        bytes_accessed=(2 * b_pad * dim * 4          # feature inputs
                        + dim * hidden * 4           # W1
                        + 2 * hidden * 4 + 4         # b1, w2 row, b2
                        + b_pad * 4),                # output column
    )

    out = pl.pallas_call(
        predictor_kernel,
        out_shape=jax.ShapeDtypeStruct((b_pad, 1), jnp.float32),
        grid_spec=pltpu.PrefetchScalarGridSpec(
            num_scalar_prefetch=0,
            grid=grid,
            in_specs=[
                pl.BlockSpec((tile_b, dim), lambda i: (i, 0)),      # token_feat tile
                pl.BlockSpec((tile_b, dim), lambda i: (i, 0)),      # graph_feat tile
                # Constant-index weight blocks (same block every step).
                # TODO(synk): if a Mosaic dump shows these re-DMA'd/double-buffered
                # per step, pin them with pipeline_mode=pl.Buffered(1).
                pl.BlockSpec((dim, hidden), lambda i: (0, 0)),      # W1 (f32, full)
                pl.BlockSpec((1, hidden),   lambda i: (0, 0)),      # b1 row
                pl.BlockSpec((1, hidden),   lambda i: (0, 0)),      # W2 as a row
                pl.BlockSpec(memory_space=pltpu.MemorySpace.SMEM),  # b2 scalar
            ],
            out_specs=pl.BlockSpec((tile_b, 1), lambda i: (i, 0)),
        ),
        compiler_params=pltpu.CompilerParams(
            dimension_semantics=("parallel",)),
        cost_estimate=cost,
    )(token_feat, graph_feat, w1_f32, b1_row, w2_row, b2_s)

    return out[:B]   # (B, 1)


# ----------------------------------------------------------------------------
# Deterministic surrogate for the (unspecified, external) combined_model.
# TODO(synk): the real `combined_model` is an external module not defined in the
# reference script; this surrogate only reproduces its interface.  It returns
# (token_feat, graph_feat); tanh(token_feat + graph_feat) is fused into the
# Pallas kernel prologue.  The data-dependent segment_sum scatter stays in XLA.
# ----------------------------------------------------------------------------
def combined_model_surrogate(params, token_idx, x, edge_index, edge_attr, batch, num_graphs):
    emb = params["emb"]                                  # (vocab, dim)
    token_feat = emb[token_idx].mean(axis=1)             # (B, dim)

    node_h = jnp.maximum(x @ params["wn"], 0.0)          # (N, dim)
    edge_h = jnp.maximum(edge_attr @ params["we"], 0.0)  # (E, dim)
    # aggregate edge messages into destination nodes
    node_h = node_h + jax.ops.segment_sum(edge_h, edge_index[1], num_segments=x.shape[0])

    # mean-pool nodes per graph
    graph_sum = jax.ops.segment_sum(node_h, batch, num_segments=num_graphs)      # (B, dim)
    graph_cnt = jax.ops.segment_sum(jnp.ones((x.shape[0], 1), jnp.float32),
                                    batch, num_segments=num_graphs)              # (B, 1)
    graph_feat = graph_sum / jnp.maximum(graph_cnt, 1.0)

    return token_feat, graph_feat


def full_model_forward(params, token_idx, x, edge_index, edge_attr, batch, num_graphs):
    token_feat, graph_feat = combined_model_surrogate(
        params, token_idx, x, edge_index, edge_attr, batch, num_graphs)          # (B, dim) x2
    return predictor_pallas(token_feat, graph_feat,
                            params["w1"], params["b1"],
                            params["w2"], params["b2"])                           # (B, 1)


# ----------------------------------------------------------------------------
# Deterministic parameter init (shapes implied by predictor(dim) & surrogate).
# ----------------------------------------------------------------------------
def init_params(key, dim, vocab, node_feat, edge_feat):
    ks = jax.random.split(key, 7)
    hidden = 2 * dim
    return {
        "emb": jax.random.normal(ks[0], (vocab, dim), jnp.float32) * 0.1,
        "wn":  jax.random.normal(ks[1], (node_feat, dim), jnp.float32) * 0.1,
        "we":  jax.random.normal(ks[2], (edge_feat, dim), jnp.float32) * 0.1,
        # predictor: Linear(dim, 2*dim) -> Dropout -> ReLU -> Linear(2*dim, 1)
        "w1":  jax.random.normal(ks[3], (dim, hidden), jnp.float32) * (1.0 / jnp.sqrt(dim)),
        "b1":  jax.random.normal(ks[4], (1, hidden), jnp.float32) * 0.01,
        "w2":  jax.random.normal(ks[5], (hidden, 1), jnp.float32) * (1.0 / jnp.sqrt(hidden)),
        "b2":  jax.random.normal(ks[6], (1, 1), jnp.float32) * 0.01,
    }


if __name__ == "__main__":
    B = 64         # graphs per batch
    dim = 32       # combined_model output / predictor input dim
    vocab = 12
    T = 6          # tokens per graph
    N = 256        # total nodes (4 per graph)
    Fn = 16        # node feature dim
    E = 512        # total edges
    Fe = 8         # edge feature dim

    key = jax.random.PRNGKey(0)
    k_par, k_tok, k_x, k_ei, k_ea = jax.random.split(key, 5)

    params = init_params(k_par, dim, vocab, Fn, Fe)

    token_idx = jax.random.randint(k_tok, (B, T), 0, vocab, dtype=jnp.int32)
    x = jax.random.normal(k_x, (N, Fn), jnp.float32)
    edge_index = jax.random.randint(k_ei, (2, E), 0, N, dtype=jnp.int32)
    edge_attr = jax.random.normal(k_ea, (E, Fe), jnp.float32)
    batch = jnp.repeat(jnp.arange(B, dtype=jnp.int32), N // B)   # (N,) graph ids

    out = full_model_forward(params, token_idx, x, edge_index, edge_attr, batch, B)
    out = jax.block_until_ready(out)

    # reference check of the fused Pallas path against plain f32 JAX
    tf, gf = combined_model_surrogate(params, token_idx, x, edge_index, edge_attr, batch, B)
    feats = jnp.tanh(tf + gf)
    ref = jnp.maximum(feats @ params["w1"] + params["b1"], 0.0) @ params["w2"] + params["b2"]
    assert out.shape == (B, 1)
    # both paths are f32; modest tolerance covers MXU default-precision differences
    assert jnp.allclose(out, ref, atol=2e-2, rtol=2e-2)

    print("KERNEL_OK")
</pallas_src>

<mosaic_0001>
module attributes {stable_mosaic.version = 11 : i64} {
  func.func @predictor_kernel(%arg0: i32, %arg1: memref<32x32xf32, #tpu.memory_space<vmem>>, %arg2: memref<32x32xf32, #tpu.memory_space<vmem>>, %arg3: memref<32x64xf32, #tpu.memory_space<vmem>>, %arg4: memref<1x64xf32, #tpu.memory_space<vmem>>, %arg5: memref<1x64xf32, #tpu.memory_space<vmem>>, %arg6: memref<1x1xf32, #tpu.memory_space<smem>>, %arg7: memref<32x1xf32, #tpu.memory_space<vmem>>) attributes {dimension_semantics = [#tpu.dimension_semantics<parallel>], iteration_bounds = array<i64: 2>, scalar_prefetch = 0 : i64, scratch_operands = 0 : i64, tpu.core_type = #tpu.core_type<tc>, window_params = [{transform_indices = @transform_0, window_bounds = array<i64: 32, 32>}, {transform_indices = @transform_1, window_bounds = array<i64: 32, 32>}, {pipeline_mode = #tpu.pipeline_mode<synchronous>, transform_indices = @transform_2, window_bounds = array<i64: 32, 64>}, {pipeline_mode = #tpu.pipeline_mode<synchronous>, transform_indices = @transform_3, window_bounds = array<i64: 1, 64>}, {pipeline_mode = #tpu.pipeline_mode<synchronous>, transform_indices = @transform_4, window_bounds = array<i64: 1, 64>}, {transform_indices = @transform_5, window_bounds = array<i64: 1, 1>}, {transform_indices = @transform_6, window_bounds = array<i64: 32, 1>}]} {
    %c0 = arith.constant 0 : index
    %c0_0 = arith.constant 0 : index
    %0 = vector.load %arg1[%c0, %c0_0] : memref<32x32xf32, #tpu.memory_space<vmem>>, vector<32x32xf32>
    %c0_1 = arith.constant 0 : index
    %c0_2 = arith.constant 0 : index
    %1 = vector.load %arg2[%c0_1, %c0_2] : memref<32x32xf32, #tpu.memory_space<vmem>>, vector<32x32xf32>
    %2 = arith.addf %0, %1 : vector<32x32xf32>
    %3 = math.tanh %2 : vector<32x32xf32>
    %c0_3 = arith.constant 0 : index
    %c0_4 = arith.constant 0 : index
    %4 = vector.load %arg3[%c0_3, %c0_4] : memref<32x64xf32, #tpu.memory_space<vmem>>, vector<32x64xf32>
    %cst = arith.constant dense<0.000000e+00> : vector<32x64xf32>
    %5 = tpu.matmul %3, %4, %cst {dimension_numbers = #tpu.dot_dimension_numbers<[1], [0], [0], [1], [0, 0, 1, 1], [], []>} : vector<32x32xf32>, vector<32x64xf32>, vector<32x64xf32> -> vector<32x64xf32>
    %c0_5 = arith.constant 0 : index
    %c0_6 = arith.constant 0 : index
    %6 = vector.load %arg4[%c0_5, %c0_6] : memref<1x64xf32, #tpu.memory_space<vmem>>, vector<1x64xf32>
    %7 = vector.broadcast %6 : vector<1x64xf32> to vector<32x64xf32>
    %8 = arith.addf %5, %7 : vector<32x64xf32>
    %cst_7 = arith.constant 0.000000e+00 : f32
    %9 = vector.broadcast %cst_7 : f32 to vector<32x64xf32>
    %10 = arith.maximumf %8, %9 : vector<32x64xf32>
    %c0_8 = arith.constant 0 : index
    %c0_9 = arith.constant 0 : index
    %11 = vector.load %arg5[%c0_8, %c0_9] : memref<1x64xf32, #tpu.memory_space<vmem>>, vector<1x64xf32>
    %12 = vector.broadcast %11 : vector<1x64xf32> to vector<32x64xf32>
    %13 = arith.mulf %10, %12 : vector<32x64xf32>
    %cst_10 = arith.constant dense<0.000000e+00> : vector<32xf32>
    %14 = vector.multi_reduction <add>, %13, %cst_10 [1] : vector<32x64xf32> to vector<32xf32>
    %15 = vector.shape_cast %14 : vector<32xf32> to vector<32x1xf32>
    %c0_11 = arith.constant 0 : index
    %c0_12 = arith.constant 0 : index
    %16 = memref.load %arg6[%c0_11, %c0_12] : memref<1x1xf32, #tpu.memory_space<smem>>
    %17 = vector.broadcast %16 : f32 to vector<32x1xf32>
    %18 = arith.addf %15, %17 : vector<32x1xf32>
    %c0_13 = arith.constant 0 : index
    %c0_14 = arith.constant 0 : index
    %19 = vector.load %arg7[%c0_13, %c0_14] : memref<32x1xf32, #tpu.memory_space<vmem>>, vector<32x1xf32>
    tpu.vector_store %arg7[%c0_13, %c0_14], %18 {strides = array<i32>} : memref<32x1xf32, #tpu.memory_space<vmem>>, vector<32x1xf32>,
    return
  }
  func.func @transform_0(%arg0: i32) -> (i32, i32) {
    %c0_i32 = arith.constant 0 : i32
    %c0_i32_0 = arith.constant 0 : i32
    return %arg0, %c0_i32 : i32, i32
  }
  func.func @transform_1(%arg0: i32) -> (i32, i32) {
    %c0_i32 = arith.constant 0 : i32
    %c0_i32_0 = arith.constant 0 : i32
    return %arg0, %c0_i32 : i32, i32
  }
  func.func @transform_2(%arg0: i32) -> (i32, i32) {
    %c0_i32 = arith.constant 0 : i32
    %c0_i32_0 = arith.constant 0 : i32
    %c0_i32_1 = arith.constant 0 : i32
    return %c0_i32, %c0_i32_0 : i32, i32
  }
  func.func @transform_3(%arg0: i32) -> (i32, i32) {
    %c0_i32 = arith.constant 0 : i32
    %c0_i32_0 = arith.constant 0 : i32
    %c0_i32_1 = arith.constant 0 : i32
    return %c0_i32, %c0_i32_0 : i32, i32
  }
  func.func @transform_4(%arg0: i32) -> (i32, i32) {
    %c0_i32 = arith.constant 0 : i32
    %c0_i32_0 = arith.constant 0 : i32
    %c0_i32_1 = arith.constant 0 : i32
    return %c0_i32, %c0_i32_0 : i32, i32
  }
  func.func @transform_5(%arg0: i32) -> (i32, i32) {
    %c0_i32 = arith.constant 0 : i32
    %c0_i32_0 = arith.constant 0 : i32
    %c0_i32_1 = arith.constant 0 : i32
    return %c0_i32, %c0_i32_0 : i32, i32
  }
  func.func @transform_6(%arg0: i32) -> (i32, i32) {
    %c0_i32 = arith.constant 0 : i32
    %c0_i32_0 = arith.constant 0 : i32
    return %arg0, %c0_i32 : i32, i32
  }
}

</mosaic_0001>

<llo_original>
// kernel: tpu_custom_call.1
$region0: #{tpu_custom_call.1}
  #allocation0 [shape = 'u32[]', space=smem, size = 0x4, offset = 0x4, fixed_abs, tag = 'smem constant byte address 0x4 - core index']
  #allocation1 [shape = 'u32[144,128]{1,0:T(1,128)}', space=vmem, size = 0x12000, scoped, tag = 'internal scratch']
  #allocation2 [shape = 'f32[1,1]{1,0:T(1,128)S(6)}', space=smem, size = 0x200, scoped, tag = 'scoped memory for tpu_custom_call.1']
  %s0 = inlined_call_operand.vmem [shape: f32[64,32], index: 0, kind: input, shape index: {}]
  %s1 = inlined_call_operand.vmem [shape: f32[64,32], index: 1, kind: input, shape index: {}]
  %s2 = inlined_call_operand.vmem [shape: f32[32,64], index: 2, kind: input, shape index: {}]
  %s3 = inlined_call_operand.vmem [shape: f32[1,64], index: 3, kind: input, shape index: {}]
  %s4 = inlined_call_operand.vmem [shape: f32[1,64], index: 4, kind: input, shape index: {}]
  %s5 = inlined_call_operand.<no memory space> [shape: f32[1,1], index: 5, kind: input, shape index: {}]
  %s6 = inlined_call_operand.vmem [shape: f32[64,1], index: 6, kind: output, shape index: {}]
  %s7 = sld [smem:[#allocation0]]
  $region57: #{tpu_custom_call.1} parent=0
    _
  %s9 = ssub.s32 1, %s7
  %s10 = scalar_select 0, %s9, %s7
  %11 = sst [smem:[#allocation2]] %s5
  loop: start=0, step=1, limit=4
  $region2: #{tpu_custom_call.1} parent=0 // loop_pre_header
    _
  $region3: #{tpu_custom_call.1} parent=0 // loop_header
    %s13 = sphi 0, %s17
    %p14 = scmp.ge.s32.totalorder %s13, 4
    %s23 = sphi 0, %s25
    %s26 = sphi 0, %s23
    %s27 = sphi 0, %s26
    %s43 = sphi 0, %s27
    %s49 = sphi 0, %s51
    %s52 = sphi 0, %s49
    %s53 = sphi 0, %s52
    %s69 = sphi 0, %s53
    %s73 = sphi 0, %s73
    %s75 = sphi 0, %s73
    %s76 = sphi 0, %s75
    %s90 = sphi 0, %s76
    %s94 = sphi 0, %s94
    %s96 = sphi 0, %s94
    %s97 = sphi 0, %s96
    %s111 = sphi 0, %s97
    %s115 = sphi 0, %s115
    %s117 = sphi 0, %s115
    %s118 = sphi 0, %s117
    %s132 = sphi 0, %s118
    %s136 = sphi 0, %s136
    %s138 = sphi 0, %s136
    %s139 = sphi 0, %s138
    %s153 = sphi 0, %s139
    %s159 = sphi 0, %s161
    %s162 = sphi 0, %s159
    %s163 = sphi 0, %s162
    %s179 = sphi 0, %s163
  $region4: #{tpu_custom_call.1} parent=0 // loop_header_branch
    %16 = sbr.rel (%p14) target = $region8
  $region5: #{tpu_custom_call.1} parent=0 // loop_body
    %s18 = ssub.s32 %s13, 1
    %s19 = ssub.s32 %s13, 2
    %s20 = sadd.s32 %s13, 1
    %s21 = ssub.s32 %s13, %s20
    %p22 = scmp.eq.s32.totalorder %s21, 0
    %s24 = sadd.s32 %s23, 1
    %s25 = scalar_select %p22, %s23, %s24
    %p28 = pneg %p22
    %p29 = scmp.eq.s32.totalorder %s13, 1
    %p30 = por %p28, %p29
    %p31 = scmp.ne.s32.totalorder %s23, %s26
    %p32 = scmp.eq.s32.totalorder %s13, 0
    %p33 = por %p31, %p32
    %p34 = scmp.ne.s32.totalorder %s23, %s26
    %p35 = scmp.eq.s32.totalorder %s18, 1
    %p36 = por %p34, %p35
    %p37 = scmp.ne.s32.totalorder %s26, %s27
    %p38 = scmp.eq.s32.totalorder %s18, 0
    %p39 = por %p37, %p38
    %p40 = scmp.ne.s32.totalorder %s26, %s27
    %p41 = scmp.eq.s32.totalorder %s19, 1
    %p42 = por %p40, %p41
    %p44 = scmp.ne.s32.totalorder %s27, %s43
    %p45 = scmp.eq.s32.totalorder %s19, 0
    %p46 = por %p44, %p45
    %s47 = ssub.s32 %s13, %s20
    %p48 = scmp.eq.s32.totalorder %s47, 0
    %s50 = sadd.s32 %s49, 1
    %s51 = scalar_select %p48, %s49, %s50
    %p54 = pneg %p48
    %p55 = scmp.eq.s32.totalorder %s13, 1
    %p56 = por %p54, %p55
    %p57 = scmp.ne.s32.totalorder %s49, %s52
    %p58 = scmp.eq.s32.totalorder %s13, 0
    %p59 = por %p57, %p58
    %p60 = scmp.ne.s32.totalorder %s49, %s52
    %p61 = scmp.eq.s32.totalorder %s18, 1
    %p62 = por %p60, %p61
    %p63 = scmp.ne.s32.totalorder %s52, %s53
    %p64 = scmp.eq.s32.totalorder %s18, 0
    %p65 = por %p63, %p64
    %p66 = scmp.ne.s32.totalorder %s52, %s53
    %p67 = scmp.eq.s32.totalorder %s19, 1
    %p68 = por %p66, %p67
    %p70 = scmp.ne.s32.totalorder %s53, %s69
    %p71 = scmp.eq.s32.totalorder %s19, 0
    %p72 = por %p70, %p71
    %s74 = sadd.s32 %s73, 1
    %p77 = scmp.eq.s32.totalorder %s13, 1
    %p78 = scmp.ne.s32.totalorder %s73, %s75
    %p79 = scmp.eq.s32.totalorder %s13, 0
    %p80 = por %p78, %p79
    %p81 = scmp.ne.s32.totalorder %s73, %s75
    %p82 = scmp.eq.s32.totalorder %s18, 1
    %p83 = por %p81, %p82
    %p84 = scmp.ne.s32.totalorder %s75, %s76
    %p85 = scmp.eq.s32.totalorder %s18, 0
    %p86 = por %p84, %p85
    %p87 = scmp.ne.s32.totalorder %s75, %s76
    %p88 = scmp.eq.s32.totalorder %s19, 1
    %p89 = por %p87, %p88
    %p91 = scmp.ne.s32.totalorder %s76, %s90
    %p92 = scmp.eq.s32.totalorder %s19, 0
    %p93 = por %p91, %p92
    %s95 = sadd.s32 %s94, 1
    %p98 = scmp.eq.s32.totalorder %s13, 1
    %p99 = scmp.ne.s32.totalorder %s94, %s96
    %p100 = scmp.eq.s32.totalorder %s13, 0
    %p101 = por %p99, %p100
    %p102 = scmp.ne.s32.totalorder %s94, %s96
    %p103 = scmp.eq.s32.totalorder %s18, 1
    %p104 = por %p102, %p103
    %p105 = scmp.ne.s32.totalorder %s96, %s97
    %p106 = scmp.eq.s32.totalorder %s18, 0
    %p107 = por %p105, %p106
    %p108 = scmp.ne.s32.totalorder %s96, %s97
    %p109 = scmp.eq.s32.totalorder %s19, 1
    %p110 = por %p108, %p109
    %p112 = scmp.ne.s32.totalorder %s97, %s111
    %p113 = scmp.eq.s32.totalorder %s19, 0
    %p114 = por %p112, %p113
    %s116 = sadd.s32 %s115, 1
    %p119 = scmp.eq.s32.totalorder %s13, 1
    %p120 = scmp.ne.s32.totalorder %s115, %s117
    %p121 = scmp.eq.s32.totalorder %s13, 0
    %p122 = por %p120, %p121
    %p123 = scmp.ne.s32.totalorder %s115, %s117
    %p124 = scmp.eq.s32.totalorder %s18, 1
    %p125 = por %p123, %p124
    %p126 = scmp.ne.s32.totalorder %s117, %s118
    %p127 = scmp.eq.s32.totalorder %s18, 0
    %p128 = por %p126, %p127
    %p129 = scmp.ne.s32.totalorder %s117, %s118
    %p130 = scmp.eq.s32.totalorder %s19, 1
    %p131 = por %p129, %p130
    %p133 = scmp.ne.s32.totalorder %s118, %s132
    %p134 = scmp.eq.s32.totalorder %s19, 0
    %p135 = por %p133, %p134
    %s137 = sadd.s32 %s136, 1
    %p140 = scmp.eq.s32.totalorder %s13, 1
    %p141 = scmp.ne.s32.totalorder %s136, %s138
    %p142 = scmp.eq.s32.totalorder %s13, 0
    %p143 = por %p141, %p142
    %p144 = scmp.ne.s32.totalorder %s136, %s138
    %p145 = scmp.eq.s32.totalorder %s18, 1
    %p146 = por %p144, %p145
    %p147 = scmp.ne.s32.totalorder %s138, %s139
    %p148 = scmp.eq.s32.totalorder %s18, 0
    %p149 = por %p147, %p148
    %p150 = scmp.ne.s32.totalorder %s138, %s139
    %p151 = scmp.eq.s32.totalorder %s19, 1
    %p152 = por %p150, %p151
    %p154 = scmp.ne.s32.totalorder %s139, %s153
    %p155 = scmp.eq.s32.totalorder %s19, 0
    %p156 = por %p154, %p155
    %s157 = ssub.s32 %s13, %s20
    %p158 = scmp.eq.s32.totalorder %s157, 0
    %s160 = sadd.s32 %s159, 1
    %s161 = scalar_select %p158, %s159, %s160
    %p164 = pneg %p158
    %p165 = scmp.eq.s32.totalorder %s13, 1
    %p166 = por %p164, %p165
    %p167 = scmp.ne.s32.totalorder %s159, %s162
    %p168 = scmp.eq.s32.totalorder %s13, 0
    %p169 = por %p167, %p168
    %p170 = scmp.ne.s32.totalorder %s159, %s162
    %p171 = scmp.eq.s32.totalorder %s18, 1
    %p172 = por %p170, %p171
    %p173 = scmp.ne.s32.totalorder %s162, %s163
    %p174 = scmp.eq.s32.totalorder %s18, 0
    %p175 = por %p173, %p174
    %p176 = scmp.ne.s32.totalorder %s162, %s163
    %p177 = scmp.eq.s32.totalorder %s19, 1
    %p178 = por %p176, %p177
    %p180 = scmp.ne.s32.totalorder %s163, %s179
    %p181 = scmp.eq.s32.totalorder %s19, 0
    %p182 = por %p180, %p181
    %p183 = scmp.le.s32.totalorder 1, %s13
    %p184 = scmp.lt.s32.totalorder %s13, 3
    %p185 = pnand %p183, %p184
    %p186 = pneg %p185
    // Predicated region
    $region9: #{tpu_custom_call.1} parent=5 // pred_check
      _
    $region10: #{tpu_custom_call.1} parent=5 // pred_check_branch
      %188 = sbr.rel (%p185) target = $region12
    $region11: #{tpu_custom_call.1} parent=5 // pred_region
      %s189 = ssub.s32 %s13, 1
      // Predicated region
      $region13: #{tpu_custom_call.1} parent=11 // pred_check
        %p190 = pneg %p86
      $region14: #{tpu_custom_call.1} parent=11 // pred_check_branch
        %192 = sbr.rel (%p190) target = $region16
      $region15: #{tpu_custom_call.1} parent=11 // pred_region
        _
      $region16: #{tpu_custom_call.1} parent=11 // pred_fallthru
        _
      // Predicated region
      $region17: #{tpu_custom_call.1} parent=11 // pred_check
        %p193 = pneg %p107
      $region18: #{tpu_custom_call.1} parent=11 // pred_check_branch
        %195 = sbr.rel (%p193) target = $region20
      $region19: #{tpu_custom_call.1} parent=11 // pred_region
        _
      $region20: #{tpu_custom_call.1} parent=11 // pred_fallthru
        _
      // Predicated region
      $region21: #{tpu_custom_call.1} parent=11 // pred_check
        %p196 = pneg %p128
      $region22: #{tpu_custom_call.1} parent=11 // pred_check_branch
        %198 = sbr.rel (%p196) target = $region24
      $region23: #{tpu_custom_call.1} parent=11 // pred_region
        _
      $region24: #{tpu_custom_call.1} parent=11 // pred_fallthru
        _
      // Predicated region
      $region25: #{tpu_custom_call.1} parent=11 // pred_check
        %p199 = pneg %p149
      $region26: #{tpu_custom_call.1} parent=11 // pred_check_branch
        %201 = sbr.rel (%p199) target = $region28
      $region27: #{tpu_custom_call.1} parent=11 // pred_region
        _
      $region28: #{tpu_custom_call.1} parent=11 // pred_fallthru
        _
    $region12: #{tpu_custom_call.1} parent=5 // pred_fallthru
      _
    %p202 = scmp.lt.s32.totalorder %s13, 2
    // Predicated region
    $region29: #{tpu_custom_call.1} parent=5 // pred_check
      %p203 = pneg %p202
    $region30: #{tpu_custom_call.1} parent=5 // pred_check_branch
      %205 = sbr.rel (%p203) target = $region32
    $region31: #{tpu_custom_call.1} parent=5 // pred_region
      // Predicated region
      $region33: #{tpu_custom_call.1} parent=31 // pred_check
        %p206 = pneg %p33
      $region34: #{tpu_custom_call.1} parent=31 // pred_check_branch
        %208 = sbr.rel (%p206) target = $region36
      $region35: #{tpu_custom_call.1} parent=31 // pred_region
        %s209 = smul.u32 4, %s13
        %p210 = scmp.lt.s32.totalorder %s209, 7
        %s211 = scalar_select %p210, %s209, 7
        %s212 = smul.addr %s211, 8
        %s213 = scalar_lea.vmem %s0, %s212
        %s214 = smul.u32 4, %s13
      $region36: #{tpu_custom_call.1} parent=31 // pred_fallthru
        _
      // Predicated region
      $region37: #{tpu_custom_call.1} parent=31 // pred_check
        %p215 = pneg %p59
      $region38: #{tpu_custom_call.1} parent=31 // pred_check_branch
        %217 = sbr.rel (%p215) target = $region40
      $region39: #{tpu_custom_call.1} parent=31 // pred_region
        %s218 = smul.u32 4, %s13
        %p219 = scmp.lt.s32.totalorder %s218, 7
        %s220 = scalar_select %p219, %s218, 7
        %s221 = smul.addr %s220, 8
        %s222 = scalar_lea.vmem %s1, %s221
        %s223 = smul.u32 4, %s13
      $region40: #{tpu_custom_call.1} parent=31 // pred_fallthru
        _
    $region32: #{tpu_custom_call.1} parent=5 // pred_fallthru
      _
    %p224 = scmp.le.s32.totalorder 1, %s13
    %p225 = scmp.lt.s32.totalorder %s13, 3
    %p226 = pnand %p224, %p225
    %p227 = pneg %p226
    // Predicated region
    $region41: #{tpu_custom_call.1} parent=5 // pred_check
      _
    $region42: #{tpu_custom_call.1} parent=5 // pred_check_branch
      %229 = sbr.rel (%p226) target = $region44
    $region43: #{tpu_custom_call.1} parent=5 // pred_region
      %s230 = ssub.s32 %s13, 1
      %s231 = smul.u32 4, %s18
      %p232 = scmp.lt.s32.totalorder %s231, 7
      %s233 = scalar_select %p232, %s231, 7
      %s234 = smul.addr %s233, 8
      %s235 = scalar_lea.vmem %s0, %s234
      %p236 = pneg %p39
      %p237 = pneg %p36
      %s238 = smul.u32 4, %s18
      %p239 = scmp.lt.s32.totalorder %s238, 7
      %s240 = scalar_select %p239, %s238, 7
      %s241 = smul.addr %s240, 8
      %s242 = scalar_lea.vmem %s1, %s241
      %p243 = pneg %p65
      %p244 = pneg %p62
      %p245 = pneg %p86
      %p246 = pneg %p83
      %p247 = pneg %p107
      %p248 = pneg %p104
      %p249 = pneg %p128
      %p250 = pneg %p125
      %p251 = pneg %p149
      %p252 = pneg %p146
      %p253 = pneg %p175
      %p254 = pneg %p172
      %s255 = smul.u32 4, %s18
      %p256 = scmp.lt.s32.totalorder %s255, 7
      %s257 = scalar_select %p256, %s255, 7
      %s258 = smul.addr %s257, 8
      %s259 = scalar_lea.vmem %s6, %s258
      %s260 = smul.u32 4, %s18
      %p261 = scmp.lt.s32.totalorder %s260, 7
      %s262 = scalar_select %p261, %s260, 7
      %s263 = smul.addr %s262, 8
      %s264 = scalar_lea.vmem %s0, %s263
      %s265 = smul.u32 4, %s18
      %s266 = smul.u32 4, %s18
      %p267 = scmp.lt.s32.totalorder %s266, 7
      %s268 = scalar_select %p267, %s266, 7
      %s269 = smul.addr %s268, 8
      %s270 = scalar_lea.vmem %s1, %s269
      %s271 = smul.u32 4, %s18
      %s272 = smul.u32 4, %s18
      %p273 = scmp.lt.s32.totalorder %s272, 7
      %s274 = scalar_select %p273, %s272, 7
      %s275 = smul.addr %s274, 8
      %s276 = scalar_lea.vmem %s6, %s275
      %s277 = smul.u32 4, %s18
      %v278 = vld [vmem:[%s264] sm:$0xff]
      %v279 = vld [vmem:[%s264 + $0x8] sm:$0xff]
      %v280 = vld [vmem:[%s264 + $0x10] sm:$0xff]
      %v281 = vld [vmem:[%s264 + $0x18] sm:$0xff]
      %v282 = vld [vmem:[%s270] sm:$0xff]
      %v283 = vld [vmem:[%s270 + $0x8] sm:$0xff]
      %v284 = vld [vmem:[%s270 + $0x10] sm:$0xff]
      %v285 = vld [vmem:[%s270 + $0x18] sm:$0xff]
      %v286 = vadd.f32 %v278, %v282
      %v287 = vadd.f32 %v279, %v283
      %v288 = vadd.f32 %v280, %v284
      %v289 = vadd.f32 %v281, %v285
      %v290 = vtanh.pop %v286
      %v291 = vtanh.pop %v287
      %v292 = vtanh.pop %v288
      %v293 = vtanh.pop %v289
      %v294 = vld [vmem:[%s2] sm:$0xff]
      %v295 = vld [vmem:[%s2 + $0x8] sm:$0xff]
      %v296 = vld [vmem:[%s2 + $0x10] sm:$0xff]
      %v297 = vld [vmem:[%s2 + $0x18] sm:$0xff]
      %v298 = vld [vmem:[%s3] sm:$0x1]
      %v300 = vlaneseq
      %v301 = vshrl.u32 %v300, 7
      %v302 = vsub.s32 0, %v301
      %v303 = vrot.slane %v298, %v302
      %vm305 = vcmask 261120
      %v307 = vsel %vm305, %v290, 0
      %v310 = vsel %vm305, %v291, 0
      %v313 = vsel %vm305, %v292, 0
      %v316 = vsel %vm305, %v293, 0
      %318 = vmatprep.subr.mxu0 0.0
      %319 = vmatpush1.msra.mxu0 0.0
      %320 = vmatprep.subr.mxu0 0.0
      %321 = vmatpush1.msra.mxu0 0.0
      %322 = vmatprep.subr.mxu0 0.0
      %323 = vmatpush1.msra.mxu0 0.0
      %324 = vmatprep.subr.mxu0 0.0
      %325 = vmatpush1.msra.mxu0 0.0
      %326 = vmatprep.subr.mxu0 0.0
      %327 = vmatpush1.msra.mxu0 0.0
      %328 = vmatprep.subr.mxu0 0.0
      %329 = vmatpush1.msra.mxu0 0.0
      %330 = vmatprep.subr.mxu0 0.0
      %331 = vmatpush1.msra.mxu0 0.0
      %332 = vmatprep.subr.mxu0 0.0
      %333 = vmatpush1.msra.mxu0 0.0
      %334 = vmatprep.subr.mxu0 0.0
      %335 = vmatpush1.msra.mxu0 0.0
      %336 = vmatprep.subr.mxu0 0.0
      %337 = vmatpush1.msra.mxu0 0.0
      %338 = vmatprep.subr.mxu0 0.0
      %339 = vmatpush1.msra.mxu0 0.0
      %340 = vmatprep.subr.mxu0 0.0
      %341 = vmatpush1.msra.mxu0 0.0
      %342 = vmatprep.subr.mxu0 0.0
      %343 = vmatpush1.msra.mxu0 %v297
      %344 = vmatprep.subr.mxu0 0.0
      %345 = vmatpush1.msra.mxu0 %v296
      %346 = vmatprep.subr.mxu0 0.0
      %347 = vmatpush1.msra.mxu0 %v295
      %348 = vmatprep.subr.mxu0 0.0
      %349 = vmatpush1.msra.mxu0 %v294
      %350 = vmatprep.subr.mxu0 0.0
      %351 = vmatpush2.msra.mxu0 0.0
      %352 = vmatprep.subr.mxu0 0.0
      %353 = vmatpush2.msra.mxu0 0.0
      %354 = vmatprep.subr.mxu0 0.0
      %355 = vmatpush2.msra.mxu0 0.0
      %356 = vmatprep.subr.mxu0 0.0
      %357 = vmatpush2.msra.mxu0 0.0
      %358 = vmatprep.subr.mxu0 0.0
      %359 = vmatpush2.msra.mxu0 0.0
      %360 = vmatprep.subr.mxu0 0.0
      %361 = vmatpush2.msra.mxu0 0.0
      %362 = vmatprep.subr.mxu0 0.0
      %363 = vmatpush2.msra.mxu0 0.0
      %364 = vmatprep.subr.mxu0 0.0
      %365 = vmatpush2.msra.mxu0 0.0
      %366 = vmatprep.subr.mxu0 0.0
      %367 = vmatpush2.msra.mxu0 0.0
      %368 = vmatprep.subr.mxu0 0.0
      %369 = vmatpush2.msra.mxu0 0.0
      %370 = vmatprep.subr.mxu0 0.0
      %371 = vmatpush2.msra.mxu0 0.0
      %372 = vmatprep.subr.mxu0 0.0
      %373 = vmatpush2.msra.mxu0 0.0
      %374 = vmatprep.subr.mxu0 0.0
      %375 = vmatpush2.msra.mxu0 0.0
      %376 = vmatprep.subr.mxu0 0.0
      %377 = vmatpush2.msra.mxu0 0.0
      %378 = vmatprep.subr.mxu0 0.0
      %379 = vmatpush2.msra.mxu0 0.0
      %380 = vmatprep.subr.mxu0 0.0
      %381 = vmatpush2.msra.mxu0 0.0
      %382 = vmatprep.mubr.f32.mxu0 0.0
      %383 = vmatmul.mubr.f32.gmra.mxu0 %v307
      %v384 = vpop.f32.mrf.mxu0
      %v385 = vadd.f32 %v303, %v384
      %v386 = vpop.f32.mrf.mxu0
      %387 = vmatprep.mubr.f32.mxu0 0.0
      %388 = vmatmul.mubr.f32.gmra.mxu0 %v310
      %v389 = vpop.f32.mrf.mxu0
      %v390 = vadd.f32 %v303, %v389
      %v391 = vpop.f32.mrf.mxu0
      %392 = vmatprep.mubr.f32.mxu0 0.0
      %393 = vmatmul.mubr.f32.gmra.mxu0 %v313
      %v394 = vpop.f32.mrf.mxu0
      %v395 = vadd.f32 %v303, %v394
      %v396 = vpop.f32.mrf.mxu0
      %397 = vmatprep.mubr.f32.mxu0 0.0
      %398 = vmatmul.mubr.f32.gmra.mxu0 %v316
      %v399 = vpop.f32.mrf.mxu0
      %v400 = vadd.f32 %v303, %v399
      %v401 = vpop.f32.mrf.mxu0
      %402 = vdwg.mxu0
      %v403 = vmax.f32 %v385, 0.0
      %v404 = vmax.f32 %v390, 0.0
      %v405 = vmax.f32 %v395, 0.0
      %v406 = vmax.f32 %v400, 0.0
      %v407 = vld [vmem:[%s4] sm:$0x1]
      %v409 = vlaneseq
      %v410 = vshrl.u32 %v409, 7
      %v411 = vsub.s32 0, %v410
      %v412 = vrot.slane %v407, %v411
      %v414 = vmul.f32 %v403, %v412
      %v415 = vmul.f32 %v404, %v412
      %v416 = vmul.f32 %v405, %v412
      %v417 = vmul.f32 %v406, %v412
      %vm418 = vcmask 523264
      %v419 = vsel %vm418, %v414, 0.0
      %420 = vadd.xlane.f32.xlu0 %v419
      %v421 = vpop.xlane.xlu0 %420
      %v422 = vsel %vm418, %v415, 0.0
      %423 = vadd.xlane.f32.xlu0 %v422
      %v424 = vpop.xlane.xlu0 %423
      %v425 = vsel %vm418, %v416, 0.0
      %426 = vadd.xlane.f32.xlu0 %v425
      %v427 = vpop.xlane.xlu0 %426
      %v428 = vsel %vm418, %v417, 0.0
      %429 = vadd.xlane.f32.xlu0 %v428
      %v430 = vpop.xlane.xlu0 %429
      %s431 = sld [smem:[#allocation2]]
      %v432 = vstv %s431
      %v433 = vadd.f32 %v421, %v432
      %v434 = vadd.f32 %v424, %v432
      %v435 = vadd.f32 %v427, %v432
      %v436 = vadd.f32 %v430, %v432
      %vm437 = vcmask 7168
      %438 = vst.msk [vmem:[%s276] sm:$0xff] %vm437, %v433
      %439 = vst.msk [vmem:[%s276 + $0x8] sm:$0xff] %vm437, %v434
      %440 = vst.msk [vmem:[%s276 + $0x10] sm:$0xff] %vm437, %v435
      %441 = vst.msk [vmem:[%s276 + $0x18] sm:$0xff] %vm437, %v436
      %s442 = smul.u32 4, %s18
      %p443 = scmp.lt.s32.totalorder %s442, 7
      %s444 = scalar_select %p443, %s442, 7
      %s445 = smul.addr %s444, 8
      %s446 = scalar_lea.vmem %s6, %s445
      // Predicated region
      $region45: #{tpu_custom_call.1} parent=43 // pred_check
        %p447 = pneg %p172
      $region46: #{tpu_custom_call.1} parent=43 // pred_check_branch
        %449 = sbr.rel (%p447) target = $region48
      $region47: #{tpu_custom_call.1} parent=43 // pred_region
        %s450 = smul.u32 4, %s18
      $region48: #{tpu_custom_call.1} parent=43 // pred_fallthru
        _
    $region44: #{tpu_custom_call.1} parent=5 // pred_fallthru
      _
    %p451 = scmp.le.s32.totalorder 2, %s13
    // Predicated region
    $region49: #{tpu_custom_call.1} parent=5 // pred_check
      %p452 = pneg %p451
    $region50: #{tpu_custom_call.1} parent=5 // pred_check_branch
      %454 = sbr.rel (%p452) target = $region52
    $region51: #{tpu_custom_call.1} parent=5 // pred_region
      %s455 = ssub.s32 %s13, 2
      // Predicated region
      $region53: #{tpu_custom_call.1} parent=51 // pred_check
        %p456 = pneg %p178
      $region54: #{tpu_custom_call.1} parent=51 // pred_check_branch
        %458 = sbr.rel (%p456) target = $region56
      $region55: #{tpu_custom_call.1} parent=51 // pred_region
        %s459 = smul.u32 4, %s19
        %p460 = scmp.lt.s32.totalorder %s459, 7
        %s461 = scalar_select %p460, %s459, 7
        %s462 = smul.addr %s461, 8
        %s463 = scalar_lea.vmem %s6, %s462
      $region56: #{tpu_custom_call.1} parent=51 // pred_fallthru
        _
    $region52: #{tpu_custom_call.1} parent=5 // pred_fallthru
      _
  $region6: #{tpu_custom_call.1} parent=0 // loop_footer
    %s17 = sadd.s32 1, %s13
  $region7: #{tpu_custom_call.1} parent=0 // loop_footer_branch
    %12 = sbr.rel target = $region3
  $region8: #{tpu_custom_call.1} parent=0 // loop_exit
    _

</llo_original>
